<compile_context>
chip_gen: v5e
topology: v5e:2x2
jax: 0.10.0
libtpu: 0.0.40
codegen_flags: <defaults>
</compile_context>

<pallas_src>
import functools

import jax
import jax.numpy as jnp
from jax.experimental import pallas as pl
from jax.experimental.pallas import tpu as pltpu

_EPS = 1e-12  # F.normalize default eps


# ---------------------------------------------------------------------------
# Kernel
# ---------------------------------------------------------------------------
def _prenorm_conv1x1_kernel(x_ref, w_ref, b_ref, o_ref, *,
                            vpu_channel_mix, mxu_dtype, mxu_precision):
    # x_ref: (Bt, C, TS) tile -- channels on sublanes, spatial on lanes
    # w_ref: (C, C)  1x1-conv weight with RMSNorm gain * sqrt(W) pre-folded
    # b_ref: (C, 1)  conv bias
    x = x_ref[...].astype(jnp.float32)

    # F.normalize(x, dim=channels): x / max(||x||_2, eps) per spatial position.
    ss = jnp.sum(x * x, axis=1, keepdims=True)             # (Bt, 1, TS)
    inv = jax.lax.rsqrt(jnp.maximum(ss, _EPS * _EPS))      # single EUP op
    y = x * inv                                            # (Bt, C, TS)

    if vpu_channel_mix:
        # Tiny C: channel mix as C broadcast multiply-adds on the VPU
        # (a C-wide MXU matmul would be pure overhead).
        w = w_ref[...].astype(jnp.float32)
        acc = w[None, :, 0:1] * y[:, 0:1, :]
        for c in range(1, y.shape[1]):
            acc = acc + w[None, :, c:c + 1] * y[:, c:c + 1, :]
    else:
        # MXU path (wrapper guarantees Bt == 1 here).
        cast = jnp.float32 if mxu_dtype is None else mxu_dtype
        acc = jax.lax.dot_general(
            w_ref[...].astype(cast), y[0].astype(cast),
            dimension_numbers=(((1,), (0,)), ((), ())),
            preferred_element_type=jnp.float32,
            precision=mxu_precision)[None]

    out = acc + b_ref[...].astype(jnp.float32)[None]       # (Bt, C, TS)
    o_ref[...] = out.astype(o_ref.dtype)


# ---------------------------------------------------------------------------
# Tiling helpers
# ---------------------------------------------------------------------------
def _round_up(x, m):
    return (x + m - 1) // m * m


def _vmem_capacity_bytes():
    try:
        return int(pltpu.get_tpu_info().vmem_capacity_bytes)
    except Exception:  # pragma: no cover - conservative (v7x-sized) fallback
        return 64 << 20


def _pick_spatial_tile(s128, max_ts):
    """Multiple of 128 close to max_ts, preferring a divisor of s128."""
    n = s128 // 128
    cap = max(max_ts // 128, 1)
    if n <= cap:
        return s128
    for k in range(cap, 0, -1):
        if n % k == 0 and 2 * k > cap:     # dividing tile, >= half the budget
            return 128 * k
    return 128 * cap                       # caller pads S up to a multiple


def _pick_batch_tile(B, n_spatial_blocks, bt_max):
    """Largest divisor of B within budget that still leaves >=2 grid blocks."""
    divs = [d for d in range(1, B + 1) if B % d == 0 and d <= max(bt_max, 1)]
    good = [d for d in divs if (B // d) * n_spatial_blocks >= 2]
    return max(good) if good else max(divs)


# ---------------------------------------------------------------------------
# Wrapper
# ---------------------------------------------------------------------------
def prenorm_conv1x1(x_nchw, g, weight, bias, *, block_budget_bytes=None):
    """PreNorm(dim=C, fn=Conv2d(C, C, 1)).forward(x), NCHW in/out."""
    B, C, H, W = x_nchw.shape
    S = H * W
    itemsize = jnp.dtype(x_nchw.dtype).itemsize

    vmem_phys = _vmem_capacity_bytes()
    if block_budget_bytes is None:
        # ~0.5-2 MiB per buffered operand; generation-aware (v7x only 64 MiB).
        block_budget_bytes = max(min(2 << 20, vmem_phys // 32),
                                 128 * C * itemsize)

    vpu_path = C <= 8   # tiny C: channel mix on the VPU, MXU otherwise

    # --- spatial (lane) tile ------------------------------------------------
    s128 = _round_up(S, 128)
    max_ts = max((block_budget_bytes // (C * itemsize)) // 128 * 128, 128)
    ts = _pick_spatial_tile(s128, max_ts)
    grid_s = -(-S // ts)

    # --- batch tile (VPU path only; MXU path keeps a clean 2-D dot) ---------
    bt_max = (block_budget_bytes // (C * ts * itemsize)) if vpu_path else 1
    bt = _pick_batch_tile(B, grid_s, bt_max)

    # v7x has 2 TensorCores: keep >= 2 parallel blocks when the data allows.
    if (B // bt) * grid_s < 2 and s128 >= 256:
        ts = 128 * ((s128 // 128 + 1) // 2)
        grid_s = -(-S // ts)
        bt = 1

    s_pad = grid_s * ts
    x_flat = x_nchw.reshape(B, C, S)       # free: collapses contiguous dims
    if s_pad != S:
        # Padded columns normalize to 0 and are sliced off after the call.
        x_flat = jnp.pad(x_flat, ((0, 0), (0, 0), (0, s_pad - S)))

    # Fold RMSNorm gain * sqrt(W) into the conv weight (one-time (C,C) op).
    g_row = (g.reshape(1, C) * (W ** 0.5)).astype(jnp.float32)
    w_g = weight.astype(jnp.float32) * g_row
    b2 = bias.reshape(C, 1).astype(jnp.float32)

    mxu_dtype = jnp.bfloat16 if x_nchw.dtype == jnp.bfloat16 else None
    mxu_precision = (jax.lax.Precision.HIGHEST if mxu_dtype is None
                     else jax.lax.Precision.DEFAULT)

    kernel = functools.partial(_prenorm_conv1x1_kernel,
                               vpu_channel_mix=vpu_path,
                               mxu_dtype=mxu_dtype,
                               mxu_precision=mxu_precision)

    # VMEM budget: double-buffered in+out blocks + in-kernel f32 temporaries.
    blk_bytes = bt * C * ts * itemsize
    need = 4 * blk_bytes + 5 * bt * C * ts * 4 + (2 << 20)
    vmem_limit = int(min(max(need, 32 << 20),
                         max(vmem_phys - (8 << 20), 32 << 20)))

    grid = (B // bt, grid_s)
    out_flat = pl.pallas_call(
        kernel,
        out_shape=jax.ShapeDtypeStruct((B, C, s_pad), x_nchw.dtype),
        grid_spec=pltpu.PrefetchScalarGridSpec(
            num_scalar_prefetch=0,
            grid=grid,
            in_specs=[
                pl.BlockSpec((bt, C, ts), lambda b, s: (b, 0, s)),
                pl.BlockSpec((C, C), lambda b, s: (0, 0)),
                pl.BlockSpec((C, 1), lambda b, s: (0, 0)),
            ],
            out_specs=pl.BlockSpec((bt, C, ts), lambda b, s: (b, 0, s)),
        ),
        compiler_params=pltpu.CompilerParams(
            dimension_semantics=("parallel", "parallel"),
            vmem_limit_bytes=vmem_limit),
    )(x_flat, w_g, b2)

    if s_pad != S:
        out_flat = out_flat[:, :, :S]
    return out_flat.reshape(B, C, H, W)


# ---------------------------------------------------------------------------
# Demo / correctness check
# ---------------------------------------------------------------------------
if __name__ == "__main__":
    key = jax.random.PRNGKey(0)
    kx, kg, kw, kb = jax.random.split(key, 4)

    B, C, H, W = 2, 4, 16, 16
    x = jax.random.normal(kx, (B, C, H, W), dtype=jnp.float32)

    # RMSNorm gain (PyTorch init is ones; perturb so the test exercises it).
    g = jnp.ones((1, C, 1, 1), jnp.float32) + \
        0.1 * jax.random.normal(kg, (1, C, 1, 1), dtype=jnp.float32)

    # fn = Conv2d(C, C, 1) parameters, PyTorch-ish uniform init.
    bound = 1.0 / (C ** 0.5)
    weight = jax.random.uniform(kw, (C, C), minval=-bound, maxval=bound,
                                dtype=jnp.float32)
    bias = jax.random.uniform(kb, (C,), minval=-bound, maxval=bound,
                              dtype=jnp.float32)

    out = jax.block_until_ready(prenorm_conv1x1(x, g, weight, bias))

    # Pure-JAX reference: fn(RMSNorm(x)) with fn = 1x1 conv.
    norm = jnp.sqrt(jnp.sum(x * x, axis=1, keepdims=True))
    xn = x / jnp.maximum(norm, 1e-12)
    y = xn * g * (W ** 0.5)
    ref = jnp.einsum("oc,bchw->bohw", weight, y,
                     precision=jax.lax.Precision.HIGHEST) \
        + bias.reshape(1, C, 1, 1)

    assert out.shape == x.shape and out.dtype == x.dtype
    assert jnp.allclose(out, ref, atol=1e-5, rtol=1e-5)
    print("KERNEL_OK")
</pallas_src>

<mosaic_0001>
module attributes {stable_mosaic.version = 11 : i64} {
  func.func @_prenorm_conv1x1_kernel(%arg0: i32, %arg1: i32, %arg2: memref<1x4x256xf32, #tpu.memory_space<vmem>>, %arg3: memref<4x4xf32, #tpu.memory_space<vmem>>, %arg4: memref<4x1xf32, #tpu.memory_space<vmem>>, %arg5: memref<1x4x256xf32, #tpu.memory_space<vmem>>) attributes {dimension_semantics = [#tpu.dimension_semantics<parallel>, #tpu.dimension_semantics<parallel>], iteration_bounds = array<i64: 2, 1>, scalar_prefetch = 0 : i64, scratch_operands = 0 : i64, tpu.core_type = #tpu.core_type<tc>, window_params = [{transform_indices = @transform_0, window_bounds = array<i64: 1, 4, 256>}, {pipeline_mode = #tpu.pipeline_mode<synchronous>, transform_indices = @transform_1, window_bounds = array<i64: 4, 4>}, {pipeline_mode = #tpu.pipeline_mode<synchronous>, transform_indices = @transform_2, window_bounds = array<i64: 4, 1>}, {transform_indices = @transform_3, window_bounds = array<i64: 1, 4, 256>}]} {
    %c0 = arith.constant 0 : index
    %c0_0 = arith.constant 0 : index
    %c0_1 = arith.constant 0 : index
    %0 = vector.load %arg2[%c0, %c0_0, %c0_1] : memref<1x4x256xf32, #tpu.memory_space<vmem>>, vector<1x4x256xf32>
    %1 = arith.mulf %0, %0 : vector<1x4x256xf32>
    %cst = arith.constant dense<0.000000e+00> : vector<1x256xf32>
    %2 = vector.multi_reduction <add>, %1, %cst [1] : vector<1x4x256xf32> to vector<1x256xf32>
    %3 = vector.shape_cast %2 : vector<1x256xf32> to vector<1x1x256xf32>
    %cst_2 = arith.constant 1.000000e-24 : f32
    %4 = vector.broadcast %cst_2 : f32 to vector<1x1x256xf32>
    %5 = arith.maximumf %3, %4 : vector<1x1x256xf32>
    %6 = math.rsqrt %5 : vector<1x1x256xf32>
    %7 = vector.broadcast %6 : vector<1x1x256xf32> to vector<1x4x256xf32>
    %8 = arith.mulf %0, %7 : vector<1x4x256xf32>
    %c0_3 = arith.constant 0 : index
    %c0_4 = arith.constant 0 : index
    %9 = vector.load %arg3[%c0_3, %c0_4] : memref<4x4xf32, #tpu.memory_space<vmem>>, vector<4x4xf32>
    %10 = vector.extract_strided_slice %9 {offsets = [0, 0], sizes = [4, 1], strides = [1, 1]} : vector<4x4xf32> to vector<4x1xf32>
    %11 = vector.shape_cast %10 : vector<4x1xf32> to vector<1x4x1xf32>
    %12 = vector.extract_strided_slice %8 {offsets = [0, 0, 0], sizes = [1, 1, 256], strides = [1, 1, 1]} : vector<1x4x256xf32> to vector<1x1x256xf32>
    %13 = vector.broadcast %11 : vector<1x4x1xf32> to vector<1x4x256xf32>
    %14 = vector.broadcast %12 : vector<1x1x256xf32> to vector<1x4x256xf32>
    %15 = arith.mulf %13, %14 : vector<1x4x256xf32>
    %16 = vector.extract_strided_slice %9 {offsets = [0, 1], sizes = [4, 1], strides = [1, 1]} : vector<4x4xf32> to vector<4x1xf32>
    %17 = vector.shape_cast %16 : vector<4x1xf32> to vector<1x4x1xf32>
    %18 = vector.extract_strided_slice %8 {offsets = [0, 1, 0], sizes = [1, 1, 256], strides = [1, 1, 1]} : vector<1x4x256xf32> to vector<1x1x256xf32>
    %19 = vector.broadcast %17 : vector<1x4x1xf32> to vector<1x4x256xf32>
    %20 = vector.broadcast %18 : vector<1x1x256xf32> to vector<1x4x256xf32>
    %21 = arith.mulf %19, %20 : vector<1x4x256xf32>
    %22 = arith.addf %15, %21 : vector<1x4x256xf32>
    %23 = vector.extract_strided_slice %9 {offsets = [0, 2], sizes = [4, 1], strides = [1, 1]} : vector<4x4xf32> to vector<4x1xf32>
    %24 = vector.shape_cast %23 : vector<4x1xf32> to vector<1x4x1xf32>
    %25 = vector.extract_strided_slice %8 {offsets = [0, 2, 0], sizes = [1, 1, 256], strides = [1, 1, 1]} : vector<1x4x256xf32> to vector<1x1x256xf32>
    %26 = vector.broadcast %24 : vector<1x4x1xf32> to vector<1x4x256xf32>
    %27 = vector.broadcast %25 : vector<1x1x256xf32> to vector<1x4x256xf32>
    %28 = arith.mulf %26, %27 : vector<1x4x256xf32>
    %29 = arith.addf %22, %28 : vector<1x4x256xf32>
    %30 = vector.extract_strided_slice %9 {offsets = [0, 3], sizes = [4, 1], strides = [1, 1]} : vector<4x4xf32> to vector<4x1xf32>
    %31 = vector.shape_cast %30 : vector<4x1xf32> to vector<1x4x1xf32>
    %32 = vector.extract_strided_slice %8 {offsets = [0, 3, 0], sizes = [1, 1, 256], strides = [1, 1, 1]} : vector<1x4x256xf32> to vector<1x1x256xf32>
    %33 = vector.broadcast %31 : vector<1x4x1xf32> to vector<1x4x256xf32>
    %34 = vector.broadcast %32 : vector<1x1x256xf32> to vector<1x4x256xf32>
    %35 = arith.mulf %33, %34 : vector<1x4x256xf32>
    %36 = arith.addf %29, %35 : vector<1x4x256xf32>
    %c0_5 = arith.constant 0 : index
    %c0_6 = arith.constant 0 : index
    %37 = vector.load %arg4[%c0_5, %c0_6] : memref<4x1xf32, #tpu.memory_space<vmem>>, vector<4x1xf32>
    %38 = vector.shape_cast %37 : vector<4x1xf32> to vector<1x4x1xf32>
    %39 = vector.broadcast %38 : vector<1x4x1xf32> to vector<1x4x256xf32>
    %40 = arith.addf %36, %39 : vector<1x4x256xf32>
    %c0_7 = arith.constant 0 : index
    %c0_8 = arith.constant 0 : index
    %c0_9 = arith.constant 0 : index
    %41 = vector.load %arg5[%c0_7, %c0_8, %c0_9] : memref<1x4x256xf32, #tpu.memory_space<vmem>>, vector<1x4x256xf32>
    tpu.vector_store %arg5[%c0_7, %c0_8, %c0_9], %40 {strides = array<i32>} : memref<1x4x256xf32, #tpu.memory_space<vmem>>, vector<1x4x256xf32>,
    return
  }
  func.func @transform_0(%arg0: i32, %arg1: i32) -> (i32, i32, i32) {
    %c0_i32 = arith.constant 0 : i32
    %c0_i32_0 = arith.constant 0 : i32
    return %arg0, %c0_i32, %arg1 : i32, i32, i32
  }
  func.func @transform_1(%arg0: i32, %arg1: i32) -> (i32, i32) {
    %c0_i32 = arith.constant 0 : i32
    %c0_i32_0 = arith.constant 0 : i32
    %c0_i32_1 = arith.constant 0 : i32
    return %c0_i32, %c0_i32_0 : i32, i32
  }
  func.func @transform_2(%arg0: i32, %arg1: i32) -> (i32, i32) {
    %c0_i32 = arith.constant 0 : i32
    %c0_i32_0 = arith.constant 0 : i32
    %c0_i32_1 = arith.constant 0 : i32
    return %c0_i32, %c0_i32_0 : i32, i32
  }
  func.func @transform_3(%arg0: i32, %arg1: i32) -> (i32, i32, i32) {
    %c0_i32 = arith.constant 0 : i32
    %c0_i32_0 = arith.constant 0 : i32
    return %arg0, %c0_i32, %arg1 : i32, i32, i32
  }
}

</mosaic_0001>

<llo_original>
// kernel: tpu_custom_call.1
$region0: #{tpu_custom_call.1}
  #allocation0 [shape = 'u32[]', space=smem, size = 0x4, offset = 0x4, fixed_abs, tag = 'smem constant byte address 0x4 - core index']
  #allocation1 [shape = 'u32[72,128]{1,0:T(1,128)}', space=vmem, size = 0x9000, scoped, tag = 'internal scratch']
  %s0 = inlined_call_operand.hbm [shape: f32[2,4,256], index: 0, kind: input, shape index: {}]
  %s1 = inlined_call_operand.vmem [shape: f32[4,4], index: 1, kind: input, shape index: {}]
  %s2 = inlined_call_operand.vmem [shape: f32[4,1], index: 2, kind: input, shape index: {}]
  %s3 = inlined_call_operand.hbm [shape: f32[2,4,256], index: 3, kind: output, shape index: {}]
  %s4 = sld [smem:[#allocation0]]
  $region49: #{tpu_custom_call.1} parent=0
    _
  %s6 = ssub.s32 1, %s4
  %s7 = scalar_select 0, %s6, %s4
  $region1: #{tpu_custom_call.1} parent=0
    #allocation2 [shape = 'u8[8192]{0}', space=vmem, size = 0x2000, scoped, tag = 'input window, operand 0']
    #allocation3 [shape = 's32[2]{0}', space=sflag, size = 0x8, scoped, tag = 'scoped memory for tpu_custom_call.1']
    #allocation4 [shape = 's32[2]{0}', space=sflag, size = 0x8, scoped, tag = 'scoped memory for tpu_custom_call.1']
    #allocation5 [shape = 'u8[8192]{0}', space=vmem, size = 0x2000, scoped, tag = 'output window, operand 0']
    %8 = vsyncpa [#allocation3], 0
    %s9 = scalar_lea.sflag [#allocation3], 1
    %10 = vsyncpa %s9, 0
    %11 = vsyncpa [#allocation4], 0
    %s12 = scalar_lea.sflag [#allocation4], 1
    %13 = vsyncpa %s12, 0
    loop: start=0, step=1, limit=4
    $region2: #{tpu_custom_call.1} parent=1 // loop_pre_header
      _
    $region3: #{tpu_custom_call.1} parent=1 // loop_header
      %s15 = sphi 0, %s19
      %p16 = scmp.ge.s32.totalorder %s15, 4
      %s22 = sphi 0, %s34
      %s23 = sphi 0, %s30
      %s24 = sphi 0, %s22
      %s25 = sphi 0, %s23
      %s26 = sphi 0, %s24
      %s27 = sphi 0, %s25
      %s39 = sphi 0, %s41
      %s42 = sphi 0, %s39
      %s43 = sphi 0, %s42
      %s59 = sphi 0, %s43
      %s63 = sphi 0, %s63
      %s65 = sphi 0, %s63
      %s66 = sphi 0, %s65
      %s80 = sphi 0, %s66
      %s84 = sphi 0, %s84
      %s86 = sphi 0, %s84
      %s87 = sphi 0, %s86
      %s101 = sphi 0, %s87
      %s109 = sphi 0, %s111
      %s112 = sphi 0, %s109
      %s113 = sphi 0, %s112
      %s129 = sphi 0, %s113
    $region4: #{tpu_custom_call.1} parent=1 // loop_header_branch
      %18 = sbr.rel (%p16) target = $region8
    $region5: #{tpu_custom_call.1} parent=1 // loop_body
      %s20 = ssub.s32 %s15, 1
      %s21 = ssub.s32 %s15, 2
      %s28 = sadd.s32 1, %s23
      %p29 = scmp.ge.s32.totalorder %s28, 1
      %s30 = scalar_select %p29, 0, %s28
      %s31 = sadd.s32 1, %s22
      %s32 = scalar_select %p29, %s31, %s22
      %p33 = scmp.ge.s32.totalorder %s32, 2
      %s34 = scalar_select %p33, 0, %s32
      %s35 = ssub.s32 %s22, %s34
      %s36 = ssub.s32 %s23, %s30
      %s37 = sor.u32 %s35, %s36
      %p38 = scmp.eq.s32.totalorder %s37, 0
      %s40 = sadd.s32 %s39, 1
      %s41 = scalar_select %p38, %s39, %s40
      %p44 = pneg %p38
      %p45 = scmp.eq.s32.totalorder %s15, 1
      %p46 = por %p44, %p45
      %p47 = scmp.ne.s32.totalorder %s39, %s42
      %p48 = scmp.eq.s32.totalorder %s15, 0
      %p49 = por %p47, %p48
      %p50 = scmp.ne.s32.totalorder %s39, %s42
      %p51 = scmp.eq.s32.totalorder %s20, 1
      %p52 = por %p50, %p51
      %p53 = scmp.ne.s32.totalorder %s42, %s43
      %p54 = scmp.eq.s32.totalorder %s20, 0
      %p55 = por %p53, %p54
      %p56 = scmp.ne.s32.totalorder %s42, %s43
      %p57 = scmp.eq.s32.totalorder %s21, 1
      %p58 = por %p56, %p57
      %p60 = scmp.ne.s32.totalorder %s43, %s59
      %p61 = scmp.eq.s32.totalorder %s21, 0
      %p62 = por %p60, %p61
      %s64 = sadd.s32 %s63, 1
      %p67 = scmp.eq.s32.totalorder %s15, 1
      %p68 = scmp.ne.s32.totalorder %s63, %s65
      %p69 = scmp.eq.s32.totalorder %s15, 0
      %p70 = por %p68, %p69
      %p71 = scmp.ne.s32.totalorder %s63, %s65
      %p72 = scmp.eq.s32.totalorder %s20, 1
      %p73 = por %p71, %p72
      %p74 = scmp.ne.s32.totalorder %s65, %s66
      %p75 = scmp.eq.s32.totalorder %s20, 0
      %p76 = por %p74, %p75
      %p77 = scmp.ne.s32.totalorder %s65, %s66
      %p78 = scmp.eq.s32.totalorder %s21, 1
      %p79 = por %p77, %p78
      %p81 = scmp.ne.s32.totalorder %s66, %s80
      %p82 = scmp.eq.s32.totalorder %s21, 0
      %p83 = por %p81, %p82
      %s85 = sadd.s32 %s84, 1
      %p88 = scmp.eq.s32.totalorder %s15, 1
      %p89 = scmp.ne.s32.totalorder %s84, %s86
      %p90 = scmp.eq.s32.totalorder %s15, 0
      %p91 = por %p89, %p90
      %p92 = scmp.ne.s32.totalorder %s84, %s86
      %p93 = scmp.eq.s32.totalorder %s20, 1
      %p94 = por %p92, %p93
      %p95 = scmp.ne.s32.totalorder %s86, %s87
      %p96 = scmp.eq.s32.totalorder %s20, 0
      %p97 = por %p95, %p96
      %p98 = scmp.ne.s32.totalorder %s86, %s87
      %p99 = scmp.eq.s32.totalorder %s21, 1
      %p100 = por %p98, %p99
      %p102 = scmp.ne.s32.totalorder %s87, %s101
      %p103 = scmp.eq.s32.totalorder %s21, 0
      %p104 = por %p102, %p103
      %s105 = ssub.s32 %s22, %s34
      %s106 = ssub.s32 %s23, %s30
      %s107 = sor.u32 %s105, %s106
      %p108 = scmp.eq.s32.totalorder %s107, 0
      %s110 = sadd.s32 %s109, 1
      %s111 = scalar_select %p108, %s109, %s110
      %p114 = pneg %p108
      %p115 = scmp.eq.s32.totalorder %s15, 1
      %p116 = por %p114, %p115
      %p117 = scmp.ne.s32.totalorder %s109, %s112
      %p118 = scmp.eq.s32.totalorder %s15, 0
      %p119 = por %p117, %p118
      %p120 = scmp.ne.s32.totalorder %s109, %s112
      %p121 = scmp.eq.s32.totalorder %s20, 1
      %p122 = por %p120, %p121
      %p123 = scmp.ne.s32.totalorder %s112, %s113
      %p124 = scmp.eq.s32.totalorder %s20, 0
      %p125 = por %p123, %p124
      %p126 = scmp.ne.s32.totalorder %s112, %s113
      %p127 = scmp.eq.s32.totalorder %s21, 1
      %p128 = por %p126, %p127
      %p130 = scmp.ne.s32.totalorder %s113, %s129
      %p131 = scmp.eq.s32.totalorder %s21, 0
      %p132 = por %p130, %p131
      %p133 = scmp.le.s32.totalorder 1, %s15
      %p134 = scmp.lt.s32.totalorder %s15, 3
      %p135 = pnand %p133, %p134
      %p136 = pneg %p135
      // Predicated region
      $region9: #{tpu_custom_call.1} parent=5 // pred_check
        _
      $region10: #{tpu_custom_call.1} parent=5 // pred_check_branch
        %138 = sbr.rel (%p135) target = $region12
      $region11: #{tpu_custom_call.1} parent=5 // pred_region
        %s139 = ssub.s32 %s15, 1
        // Predicated region
        $region13: #{tpu_custom_call.1} parent=11 // pred_check
          %p140 = pneg %p76
        $region14: #{tpu_custom_call.1} parent=11 // pred_check_branch
          %142 = sbr.rel (%p140) target = $region16
        $region15: #{tpu_custom_call.1} parent=11 // pred_region
          _
        $region16: #{tpu_custom_call.1} parent=11 // pred_fallthru
          _
        // Predicated region
        $region17: #{tpu_custom_call.1} parent=11 // pred_check
          %p143 = pneg %p97
        $region18: #{tpu_custom_call.1} parent=11 // pred_check_branch
          %145 = sbr.rel (%p143) target = $region20
        $region19: #{tpu_custom_call.1} parent=11 // pred_region
          _
        $region20: #{tpu_custom_call.1} parent=11 // pred_fallthru
          _
      $region12: #{tpu_custom_call.1} parent=5 // pred_fallthru
        _
      %p146 = scmp.lt.s32.totalorder %s15, 2
      // Predicated region
      $region21: #{tpu_custom_call.1} parent=5 // pred_check
        %p147 = pneg %p146
      $region22: #{tpu_custom_call.1} parent=5 // pred_check_branch
        %149 = sbr.rel (%p147) target = $region24
      $region23: #{tpu_custom_call.1} parent=5 // pred_region
        // Predicated region
        $region25: #{tpu_custom_call.1} parent=23 // pred_check
          %p150 = pneg %p49
        $region26: #{tpu_custom_call.1} parent=23 // pred_check_branch
          %152 = sbr.rel (%p150) target = $region28
        $region27: #{tpu_custom_call.1} parent=23 // pred_region
          %s153 = sand.u32 %s39, 1
          %s154 = scalar_lea.sflag [#allocation3], %s153
          %s155 = sand.u32 %s39, 1
          %s156 = smul.addr %s155, 8
          %s157 = scalar_lea.vmem [#allocation2], %s156
          %s158 = smul.u32 2, %s23
          %160 = vsyncadd %s154, 0
          %s161 = smul.addr %s22, 2
          %s162 = sadd.s32 %s158, %s161
          %s163 = smul.addr %s162, 4
          %s164 = scalar_lea.hbm %s0, %s163
          %s166 = sshll.u32 %s164, 4
          %s167 = int_to_ptr.hbm [resolvable:$true] %s166
          %s168 = sshll.u32 %s157, 4
          %s169 = int_to_ptr.vmem [resolvable:$true] %s168
          %171 = dma.hbm_to_vmem [thread:$0]  %s167, 128, %s169, %s154
        $region28: #{tpu_custom_call.1} parent=23 // pred_fallthru
          _
      $region24: #{tpu_custom_call.1} parent=5 // pred_fallthru
        _
      %p172 = scmp.le.s32.totalorder 1, %s15
      %p173 = scmp.lt.s32.totalorder %s15, 3
      %p174 = pnand %p172, %p173
      %p175 = pneg %p174
      // Predicated region
      $region29: #{tpu_custom_call.1} parent=5 // pred_check
        _
      $region30: #{tpu_custom_call.1} parent=5 // pred_check_branch
        %177 = sbr.rel (%p174) target = $region32
      $region31: #{tpu_custom_call.1} parent=5 // pred_region
        %s178 = ssub.s32 %s15, 1
        %s179 = sand.u32 %s42, 1
        %s180 = scalar_lea.sflag [#allocation3], %s179
        %s181 = sand.u32 %s42, 1
        %s182 = smul.addr %s181, 8
        %s183 = scalar_lea.vmem [#allocation2], %s182
        // Predicated region
        $region33: #{tpu_custom_call.1} parent=31 // pred_check
          %p184 = pneg %p55
        $region34: #{tpu_custom_call.1} parent=31 // pred_check_branch
          %186 = sbr.rel (%p184) target = $region36
        $region35: #{tpu_custom_call.1} parent=31 // pred_region
          %188 = dma.done %s180, 128
        $region36: #{tpu_custom_call.1} parent=31 // pred_fallthru
          _
        %s189 = sand.u32 %s42, 1
        %s190 = scalar_lea.sflag [#allocation3], %s189
        %s191 = sand.u32 %s42, 1
        %s192 = smul.addr %s191, 8
        %s193 = scalar_lea.vmem [#allocation2], %s192
        %p194 = pneg %p55
        %p195 = pneg %p52
        %p196 = pneg %p76
        %p197 = pneg %p73
        %p198 = pneg %p97
        %p199 = pneg %p94
        %p200 = pneg %p125
        %p201 = pneg %p122
        %s202 = sand.u32 %s112, 1
        %s203 = scalar_lea.sflag [#allocation4], %s202
        %s204 = sand.u32 %s112, 1
        %s205 = smul.addr %s204, 8
        %s206 = scalar_lea.vmem [#allocation5], %s205
        %s207 = smul.u32 2, %s25
        %s208 = smul.u32 2, %s25
        %v209 = vld [vmem:[%s183] sm:$0xff]
        %v210 = vmul.f32 %v209, %v209
        %212 = vst [vmem:[#allocation1] ss:$2 sm:$0xff] %v210
        %v213 = vld.sshfl [vmem:[#allocation1] sm:$0xff pattern:$0x75316420]
        %v214 = vld.sshfl [vmem:[#allocation1 + $0x8] sm:$0xff pattern:$0x75316420]
        %vm217 = vcmask 1043456
        %v218 = vsel %vm217, %v213, 0.0
        %v219 = vrot.slane %v218, 4
        %v220 = vadd.f32 %v218, %v219
        %v221 = vrot.slane %v220, 2
        %v222 = vadd.f32 %v220, %v221
        %v223 = vrot.slane %v222, 1
        %v224 = vadd.f32 %v222, %v223
        %v225 = vsel %vm217, %v214, 0.0
        %v226 = vrot.slane %v225, 4
        %v227 = vadd.f32 %v225, %v226
        %v228 = vrot.slane %v227, 2
        %v229 = vadd.f32 %v227, %v228
        %v230 = vrot.slane %v229, 1
        %v231 = vadd.f32 %v229, %v230
        %v232 = vmax.f32 %v224, 1e-24
        %v233 = vmax.f32 %v231, 1e-24
        %v234 = vrsqrt.pop %v232
        %v235 = vmul.f32 %v234, %v232
        %v236 = vmul.f32 %v235, %v234
        %v237 = vmul.f32 0.5, %v236
        %v238 = vsub.f32 1.5, %v237
        %v239 = vmul.f32 %v234, %v238
        %vm240 = vweird.f32 %v232
        %vm241 = vweird.f32 %v234
        %vm242 = vmor %vm240, %vm241
        %v243 = vsel %vm242, %v234, %v239
        %v244 = vrsqrt.pop %v233
        %v245 = vmul.f32 %v244, %v233
        %v246 = vmul.f32 %v245, %v244
        %v247 = vmul.f32 0.5, %v246
        %v248 = vsub.f32 1.5, %v247
        %v249 = vmul.f32 %v244, %v248
        %vm250 = vweird.f32 %v233
        %vm251 = vweird.f32 %v244
        %vm252 = vmor %vm250, %vm251
        %v253 = vsel %vm252, %v244, %v249
        %v256 = vrot.slane %v253, 4
        %v257 = vsel %vm217, %v243, %v256
        %v259 = vmul.f32 %v209, %v257
        %v260 = vld [vmem:[%s1] sm:$0xf]
        %262 = vset.pattern.permute.xlu0 0
        %263 = vperm.xlu0 %262, %v260
        %v264 = vpop.permute.xlu0 %263
        %v267 = vperm.slane %v259, 0
        %v268 = vperm.slane %v259, 4
        %v271 = vperm.slane %v267, 0
        %v272 = vperm.slane %v268, 0
        %v273 = vmul.f32 %v264, %v271
        %v274 = vmul.f32 %v264, %v272
        %275 = vset.pattern.permute.xlu0 1
        %276 = vperm.xlu0 %275, %v260
        %v277 = vpop.permute.xlu0 %276
        %v279 = vperm.slane %v259, 1
        %v280 = vperm.slane %v259, 5
        %v283 = vperm.slane %v279, 1
        %v284 = vperm.slane %v280, 1
        %v285 = vmul.f32 %v277, %v283
        %v286 = vmul.f32 %v277, %v284
        %v287 = vadd.f32 %v273, %v285
        %v288 = vadd.f32 %v274, %v286
        %289 = vset.pattern.permute.xlu0 2
        %290 = vperm.xlu0 %289, %v260
        %v291 = vpop.permute.xlu0 %290
        %v293 = vperm.slane %v259, 2
        %v294 = vperm.slane %v259, 6
        %v297 = vperm.slane %v293, 2
        %v298 = vperm.slane %v294, 2
        %v299 = vmul.f32 %v291, %v297
        %v300 = vmul.f32 %v291, %v298
        %v301 = vadd.f32 %v287, %v299
        %v302 = vadd.f32 %v288, %v300
        %303 = vset.pattern.permute.xlu0 3
        %304 = vperm.xlu0 %303, %v260
        %v305 = vpop.permute.xlu0 %304
        %v307 = vperm.slane %v259, 3
        %v308 = vperm.slane %v259, 7
        %v311 = vperm.slane %v307, 3
        %v312 = vperm.slane %v308, 3
        %v313 = vmul.f32 %v305, %v311
        %v314 = vmul.f32 %v305, %v312
        %v315 = vadd.f32 %v301, %v313
        %v316 = vadd.f32 %v302, %v314
        %v317 = vld [vmem:[%s2] sm:$0xf]
        %319 = vset.pattern.permute.xlu0 0
        %320 = vperm.xlu0 %319, %v317
        %v321 = vpop.permute.xlu0 %320
        %v323 = vadd.f32 %v315, %v321
        %v324 = vadd.f32 %v316, %v321
        %v327 = vrot.slane %v324, 4
        %v328 = vsel %vm217, %v323, %v327
        %330 = vst [vmem:[%s206] sm:$0xff] %v328
        %s331 = sand.u32 %s112, 1
        %s332 = scalar_lea.sflag [#allocation4], %s331
        %s333 = sand.u32 %s112, 1
        %s334 = smul.addr %s333, 8
        %s335 = scalar_lea.vmem [#allocation5], %s334
        // Predicated region
        $region37: #{tpu_custom_call.1} parent=31 // pred_check
          %p336 = pneg %p122
        $region38: #{tpu_custom_call.1} parent=31 // pred_check_branch
          %338 = sbr.rel (%p336) target = $region40
        $region39: #{tpu_custom_call.1} parent=31 // pred_region
          %s339 = smul.u32 2, %s25
          %341 = vsyncadd %s332, 0
          %s342 = smul.addr %s24, 2
          %s343 = sadd.s32 %s339, %s342
          %s344 = smul.addr %s343, 4
          %s345 = scalar_lea.hbm %s3, %s344
          %s347 = sshll.u32 %s335, 4
          %s348 = int_to_ptr.vmem [resolvable:$true] %s347
          %s349 = sshll.u32 %s345, 4
          %s350 = int_to_ptr.hbm [resolvable:$true] %s349
          %352 = dma.vmem_to_hbm [thread:$0]  %s348, 128, %s350, %s332
        $region40: #{tpu_custom_call.1} parent=31 // pred_fallthru
          _
      $region32: #{tpu_custom_call.1} parent=5 // pred_fallthru
        _
      %p353 = scmp.le.s32.totalorder 2, %s15
      // Predicated region
      $region41: #{tpu_custom_call.1} parent=5 // pred_check
        %p354 = pneg %p353
      $region42: #{tpu_custom_call.1} parent=5 // pred_check_branch
        %356 = sbr.rel (%p354) target = $region44
      $region43: #{tpu_custom_call.1} parent=5 // pred_region
        %s357 = ssub.s32 %s15, 2
        // Predicated region
        $region45: #{tpu_custom_call.1} parent=43 // pred_check
          %p358 = pneg %p128
        $region46: #{tpu_custom_call.1} parent=43 // pred_check_branch
          %360 = sbr.rel (%p358) target = $region48
        $region47: #{tpu_custom_call.1} parent=43 // pred_region
          %s361 = sand.u32 %s113, 1
          %s362 = scalar_lea.sflag [#allocation4], %s361
          %s363 = sand.u32 %s113, 1
          %s364 = smul.addr %s363, 8
          %s365 = scalar_lea.vmem [#allocation5], %s364
          %367 = dma.done %s362, 128
        $region48: #{tpu_custom_call.1} parent=43 // pred_fallthru
          _
      $region44: #{tpu_custom_call.1} parent=5 // pred_fallthru
        _
    $region6: #{tpu_custom_call.1} parent=1 // loop_footer
      %s19 = sadd.s32 1, %s15
    $region7: #{tpu_custom_call.1} parent=1 // loop_footer_branch
      %14 = sbr.rel target = $region3
    $region8: #{tpu_custom_call.1} parent=1 // loop_exit
      _
    %368 = vsyncpa [#allocation3], 1
    %s369 = scalar_lea.sflag [#allocation3], 1
    %370 = vsyncpa %s369, 1
    %371 = vsyncpa [#allocation4], 1
    %s372 = scalar_lea.sflag [#allocation4], 1
    %373 = vsyncpa %s372, 1

</llo_original>
